<compile_context>
chip_gen: v7x
topology: tpu7x:2x2x1
jax: 0.10.0
libtpu: 0.0.40
codegen_flags: <defaults>
</compile_context>

<pallas_src>
from functools import partial
from math import sqrt

import jax
import jax.numpy as jnp
from jax import lax
from jax.experimental import pallas as pl
from jax.experimental.pallas import tpu as pltpu


_NEG = -1e30  # large-negative fill standing in for the module's masked_fill


def _round_up(x, m):
    return ((x + m - 1) // m) * m


def _sublane_align(dtype):
    return {4: 8, 2: 16, 1: 32}.get(jnp.dtype(dtype).itemsize, 8)


def _vmem_cap_bytes():
    """Physical VMEM per TensorCore minus headroom for Mosaic internals."""
    cap = 64 * 1024 * 1024  # conservative default: v7x per-TC VMEM
    try:
        fn = getattr(pltpu, "get_tpu_info", None)
        if fn is not None:
            cap = int(getattr(fn(), "vmem_capacity_bytes", cap))
    except Exception:
        pass
    return cap - (8 << 20)


def _pad23(arr, d1, d2, fill=0):
    p1 = (0, 0) if d1 is None else (0, d1 - arr.shape[1])
    p2 = (0, 0) if d2 is None else (0, d2 - arr.shape[2])
    if p1 == (0, 0) and p2 == (0, 0):
        return arr
    return jnp.pad(arr, ((0, 0), p1, p2), constant_values=fill)


# --------------------------------------------------------------------------
# Resident flash kernel (output_attention=False, K/V fit in VMEM).
# grid = (B*H, L//tL); K/V blocks are full-S and constant across the L axis.
# --------------------------------------------------------------------------
def _flash_resident_kernel(*refs, scale, causal, has_mask, tL, tS, S, S_pad,
                           bf16_p):
    if has_mask:
        q_ref, k_ref, v_ref, mask_ref, o_ref, m_sc, l_sc, acc_sc = refs
    else:
        q_ref, k_ref, v_ref, o_ref, m_sc, l_sc, acc_sc = refs
        mask_ref = None

    li = pl.program_id(1)
    n_chunks = S_pad // tS

    m_sc[...] = jnp.full_like(m_sc, -jnp.inf)
    l_sc[...] = jnp.zeros_like(l_sc)
    acc_sc[...] = jnp.zeros_like(acc_sc)

    q = q_ref[...]
    q = q * jnp.asarray(scale, q.dtype)           # scale folded into (tL, E) q

    def step(c, apply_mask):
        off = pl.multiple_of(c * tS, tS)
        k = k_ref[pl.ds(off, tS), :]              # (tS, E)
        v = v_ref[pl.ds(off, tS), :]              # (tS, D)
        s = lax.dot_general(q, k, (((1,), (1,)), ((), ())),
                            preferred_element_type=jnp.float32)   # (tL, tS)
        if apply_mask:
            if causal:
                row = li * tL + lax.broadcasted_iota(jnp.int32, s.shape, 0)
                col = off + lax.broadcasted_iota(jnp.int32, s.shape, 1)
                bad = col > row
                if S_pad > S:
                    bad = jnp.logical_or(bad, col >= S)
                s = jnp.where(bad, jnp.float32(_NEG), s)
            elif has_mask:
                mk = mask_ref[:, pl.ds(off, tS)]
                s = jnp.where(mk != 0, jnp.float32(_NEG), s)
            elif S_pad > S:
                col = off + lax.broadcasted_iota(jnp.int32, s.shape, 1)
                s = jnp.where(col >= S, jnp.float32(_NEG), s)

        m_prev = m_sc[...]
        m_new = jnp.maximum(m_prev, jnp.max(s, axis=-1, keepdims=True))
        alpha = jnp.exp(m_prev - m_new)
        x = s - m_new
        # bf16 exp feeds the EUP at ~2x rate on v6e/v7x; m/l/acc stay f32.
        p = jnp.exp(x.astype(jnp.bfloat16)) if bf16_p else jnp.exp(x)
        l_sc[...] = alpha * l_sc[...] + jnp.sum(
            p.astype(jnp.float32), axis=-1, keepdims=True)
        acc_sc[...] = alpha * acc_sc[...] + jnp.dot(
            p.astype(v.dtype), v, preferred_element_type=jnp.float32)
        m_sc[...] = m_new

    if causal:
        # Chunks wholly above the diagonal are never visited; chunks wholly
        # below it skip the iota/compare/select masking entirely.
        n_live = jnp.minimum(n_chunks, ((li + 1) * tL + tS - 1) // tS)
        n_clear = jnp.minimum(n_live, (li * tL) // tS)

        def clear_body(c, carry):
            step(c, False)
            return carry

        def masked_body(c, carry):
            step(c, True)
            return carry

        lax.fori_loop(0, n_clear, clear_body, 0)
        lax.fori_loop(n_clear, n_live, masked_body, 0)
    else:
        apply_mask = has_mask or (S_pad > S)

        def body(c, carry):
            step(c, apply_mask)
            return carry

        lax.fori_loop(0, n_chunks, body, 0)

    o_ref[...] = (acc_sc[...] *
                  pl.reciprocal(l_sc[...], approx=True)).astype(o_ref.dtype)


def _flash_resident_call(q, k, v, mask, *, scale, causal, tL, tS, H, S,
                         bf16_p, vmem_limit):
    BH, L_pad, E = q.shape
    _, S_pad, D = v.shape
    has_mask = mask is not None
    kernel = partial(_flash_resident_kernel, scale=scale, causal=causal,
                     has_mask=has_mask, tL=tL, tS=tS, S=S, S_pad=S_pad,
                     bf16_p=bf16_p)

    in_specs = [
        pl.BlockSpec((None, tL, E), lambda bh, li: (bh, li, 0)),
        # K/V block index is constant across li -> fetched once per (b, h).
        pl.BlockSpec((None, S_pad, E), lambda bh, li: (bh, 0, 0)),
        pl.BlockSpec((None, S_pad, D), lambda bh, li: (bh, 0, 0)),
    ]
    args = [q, k, v]
    if has_mask:
        in_specs.append(
            pl.BlockSpec((None, tL, S_pad), lambda bh, li: (bh // H, li, 0)))
        args.append(mask)

    return pl.pallas_call(
        kernel,
        out_shape=jax.ShapeDtypeStruct((BH, L_pad, D), q.dtype),
        grid_spec=pltpu.PrefetchScalarGridSpec(
            num_scalar_prefetch=0,
            grid=(BH, L_pad // tL),
            in_specs=in_specs,
            out_specs=pl.BlockSpec((None, tL, D), lambda bh, li: (bh, li, 0)),
            scratch_shapes=[pltpu.VMEM((tL, 1), jnp.float32),
                            pltpu.VMEM((tL, 1), jnp.float32),
                            pltpu.VMEM((tL, D), jnp.float32)],
        ),
        compiler_params=pltpu.CompilerParams(
            dimension_semantics=("parallel", "parallel"),
            vmem_limit_bytes=vmem_limit),
    )(*args)


# --------------------------------------------------------------------------
# Streaming flash kernel (fallback for very long S).
# grid = (B*H, L//tL, S//tS); S axis last + "arbitrary"; causal K/V DMA
# clamped so skipped upper-triangle tiles are never fetched.
# --------------------------------------------------------------------------
def _flash_stream_kernel(*refs, scale, causal, has_mask, tL, tS, S, S_pad,
                         bf16_p):
    if has_mask:
        q_ref, k_ref, v_ref, mask_ref, o_ref, m_sc, l_sc, acc_sc = refs
    else:
        q_ref, k_ref, v_ref, o_ref, m_sc, l_sc, acc_sc = refs
        mask_ref = None

    li = pl.program_id(1)
    si = pl.program_id(2)

    @pl.when(si == 0)
    def _():
        m_sc[...] = jnp.full_like(m_sc, -jnp.inf)
        l_sc[...] = jnp.zeros_like(l_sc)
        acc_sc[...] = jnp.zeros_like(acc_sc)

    def _step():
        q = q_ref[...]
        q = q * jnp.asarray(scale, q.dtype)
        k = k_ref[...]
        v = v_ref[...]
        s = lax.dot_general(q, k, (((1,), (1,)), ((), ())),
                            preferred_element_type=jnp.float32)   # (tL, tS)
        if causal:
            row = li * tL + lax.broadcasted_iota(jnp.int32, s.shape, 0)
            col = si * tS + lax.broadcasted_iota(jnp.int32, s.shape, 1)
            bad = col > row
            if S_pad > S:
                bad = jnp.logical_or(bad, col >= S)
            s = jnp.where(bad, jnp.float32(_NEG), s)
        elif has_mask:
            s = jnp.where(mask_ref[...] != 0, jnp.float32(_NEG), s)
        elif S_pad > S:
            col = si * tS + lax.broadcasted_iota(jnp.int32, s.shape, 1)
            s = jnp.where(col >= S, jnp.float32(_NEG), s)

        m_prev = m_sc[...]
        m_new = jnp.maximum(m_prev, jnp.max(s, axis=-1, keepdims=True))
        alpha = jnp.exp(m_prev - m_new)
        x = s - m_new
        p = jnp.exp(x.astype(jnp.bfloat16)) if bf16_p else jnp.exp(x)
        l_sc[...] = alpha * l_sc[...] + jnp.sum(
            p.astype(jnp.float32), axis=-1, keepdims=True)
        acc_sc[...] = alpha * acc_sc[...] + jnp.dot(
            p.astype(v.dtype), v, preferred_element_type=jnp.float32)
        m_sc[...] = m_new

    if causal:
        pl.when(si * tS < (li + 1) * tL)(_step)
    else:
        _step()

    @pl.when(si == pl.num_programs(2) - 1)
    def _():
        o_ref[...] = (acc_sc[...] *
                      pl.reciprocal(l_sc[...], approx=True)).astype(o_ref.dtype)


def _flash_stream_call(q, k, v, mask, *, scale, causal, tL, tS, H, S, bf16_p,
                       vmem_limit):
    BH, L_pad, E = q.shape
    _, S_pad, D = v.shape
    has_mask = mask is not None
    kernel = partial(_flash_stream_kernel, scale=scale, causal=causal,
                     has_mask=has_mask, tL=tL, tS=tS, S=S, S_pad=S_pad,
                     bf16_p=bf16_p)

    if causal:
        # Clamp the K/V block index so grid steps skipped by the causal
        # `pl.when` re-request the previous block (Pallas elides the DMA).
        def kv_idx(bh, li, si):
            return (bh, jnp.minimum(si, ((li + 1) * tL - 1) // tS), 0)
    else:
        def kv_idx(bh, li, si):
            return (bh, si, 0)

    in_specs = [
        pl.BlockSpec((None, tL, E), lambda bh, li, si: (bh, li, 0)),
        pl.BlockSpec((None, tS, E), kv_idx),
        pl.BlockSpec((None, tS, D), kv_idx),
    ]
    args = [q, k, v]
    if has_mask:
        in_specs.append(
            pl.BlockSpec((None, tL, tS), lambda bh, li, si: (bh // H, li, si)))
        args.append(mask)

    return pl.pallas_call(
        kernel,
        out_shape=jax.ShapeDtypeStruct((BH, L_pad, D), q.dtype),
        grid_spec=pltpu.PrefetchScalarGridSpec(
            num_scalar_prefetch=0,
            grid=(BH, L_pad // tL, S_pad // tS),
            in_specs=in_specs,
            out_specs=pl.BlockSpec((None, tL, D),
                                   lambda bh, li, si: (bh, li, 0)),
            scratch_shapes=[pltpu.VMEM((tL, 1), jnp.float32),
                            pltpu.VMEM((tL, 1), jnp.float32),
                            pltpu.VMEM((tL, D), jnp.float32)],
        ),
        compiler_params=pltpu.CompilerParams(
            dimension_semantics=("parallel", "parallel", "arbitrary"),
            vmem_limit_bytes=vmem_limit),
    )(*args)


# --------------------------------------------------------------------------
# Full-row kernel: output_attention=True (A must be materialized exactly).
# grid = (B*H, L//tL); whole S per step, exact row normalization.
# --------------------------------------------------------------------------
def _fullrow_kernel(*refs, scale, causal, has_mask, tL, S, S_pad):
    if has_mask:
        q_ref, k_ref, v_ref, mask_ref, o_ref, a_ref = refs
    else:
        q_ref, k_ref, v_ref, o_ref, a_ref = refs
        mask_ref = None

    q = q_ref[...]
    q = q * jnp.asarray(scale, q.dtype)
    k = k_ref[...]
    v = v_ref[...]
    s = lax.dot_general(q, k, (((1,), (1,)), ((), ())),
                        preferred_element_type=jnp.float32)       # (tL, S_pad)
    if causal:
        li = pl.program_id(1)
        row = li * tL + lax.broadcasted_iota(jnp.int32, s.shape, 0)
        col = lax.broadcasted_iota(jnp.int32, s.shape, 1)
        bad = col > row
        if S_pad > S:
            bad = jnp.logical_or(bad, col >= S)
        s = jnp.where(bad, jnp.float32(_NEG), s)
    elif has_mask:
        s = jnp.where(mask_ref[...] != 0, jnp.float32(_NEG), s)
    elif S_pad > S:
        col = lax.broadcasted_iota(jnp.int32, s.shape, 1)
        s = jnp.where(col >= S, jnp.float32(_NEG), s)

    m = jnp.max(s, axis=-1, keepdims=True)
    e = jnp.exp(s - m)
    # Exact normalization: the materialized A rows must sum to 1.
    a = e / jnp.sum(e, axis=-1, keepdims=True)

    o_ref[...] = jnp.dot(a.astype(v.dtype), v,
                         preferred_element_type=jnp.float32).astype(o_ref.dtype)
    a_ref[...] = a.astype(a_ref.dtype)


def _fullrow_call(q, k, v, mask, *, scale, causal, tL, H, S, a_dtype,
                  vmem_limit):
    BH, L_pad, E = q.shape
    _, S_pad, D = v.shape
    has_mask = mask is not None
    kernel = partial(_fullrow_kernel, scale=scale, causal=causal,
                     has_mask=has_mask, tL=tL, S=S, S_pad=S_pad)

    in_specs = [
        pl.BlockSpec((None, tL, E), lambda bh, li: (bh, li, 0)),
        pl.BlockSpec((None, S_pad, E), lambda bh, li: (bh, 0, 0)),
        pl.BlockSpec((None, S_pad, D), lambda bh, li: (bh, 0, 0)),
    ]
    args = [q, k, v]
    if has_mask:
        in_specs.append(
            pl.BlockSpec((None, tL, S_pad), lambda bh, li: (bh // H, li, 0)))
        args.append(mask)

    return pl.pallas_call(
        kernel,
        out_shape=(jax.ShapeDtypeStruct((BH, L_pad, D), q.dtype),
                   jax.ShapeDtypeStruct((BH, L_pad, S_pad), a_dtype)),
        grid_spec=pltpu.PrefetchScalarGridSpec(
            num_scalar_prefetch=0,
            grid=(BH, L_pad // tL),
            in_specs=in_specs,
            out_specs=(pl.BlockSpec((None, tL, D), lambda bh, li: (bh, li, 0)),
                       pl.BlockSpec((None, tL, S_pad),
                                    lambda bh, li: (bh, li, 0))),
        ),
        compiler_params=pltpu.CompilerParams(
            dimension_semantics=("parallel", "parallel"),
            vmem_limit_bytes=vmem_limit),
    )(*args)


# --------------------------------------------------------------------------
# Wrapper (forward pass of the PyTorch module, eval mode)
# --------------------------------------------------------------------------
def full_attention(queries, keys, values, attn_mask=None, *, mask_flag=True,
                   scale=None, output_attention=False, _force_stream=False):
    """queries [B,L,H,E], keys [B,S,H,E], values [B,S,H,D] ->
    (V [B,L,H,D], A [B,H,L,S] or None)."""
    B, L, H, E = queries.shape
    _, S, _, D = values.shape
    scale_val = float(scale) if scale is not None else 1.0 / sqrt(E)
    BH = B * H

    # glue: head-major + fused (b, h) leading axis
    q = jnp.transpose(queries, (0, 2, 1, 3)).reshape(BH, L, E)
    k = jnp.transpose(keys, (0, 2, 1, 3)).reshape(BH, S, E)
    v = jnp.transpose(values, (0, 2, 1, 3)).reshape(BH, S, D)

    causal = bool(mask_flag) and attn_mask is None
    has_mask = bool(mask_flag) and attn_mask is not None

    mask_bls = None
    if has_mask:
        am = jnp.asarray(attn_mask).astype(bool)
        if am.ndim == 2:
            am = am[None, None]
        elif am.ndim == 3:
            am = am[:, None]
        mask_bls = jnp.broadcast_to(am, (B, 1, L, S))[:, 0].astype(jnp.int8)
        # TODO(synk): key-padding masks could travel as per-row lengths via
        # scalar prefetch (SMEM) instead of a (B, L, S) int8 stream.

    itemsize = jnp.dtype(queries.dtype).itemsize
    # dtype-aware sublane alignment for the L tile; the int8 mask block shares
    # the same second-to-last dim, so bump to 32 when a mask is present.
    align_L = max(_sublane_align(queries.dtype), 32 if has_mask else 8)
    bf16_p = jnp.dtype(values.dtype) == jnp.dtype(jnp.bfloat16)
    cap = _vmem_cap_bytes()

    def _tile_L(pref, row_cap=None):
        t = pref if row_cap is None else max(align_L, min(pref, row_cap))
        t = max(align_L, (t // align_L) * align_L)
        return min(t, _round_up(L, align_L))

    if output_attention:
        # -------- full-row path: A must be materialized --------
        S_pad = _round_up(S, 128)
        row_cap = max(align_L, (6 << 20) // (4 * S_pad))   # bound live temps
        tL = _tile_L(256, row_cap=row_cap)
        L_pad = _round_up(L, tL)
        qp = _pad23(q, L_pad, None)
        kp = _pad23(k, S_pad, None)
        vp = _pad23(v, S_pad, None)
        maskp = _pad23(mask_bls, L_pad, S_pad, fill=1) if has_mask else None
        est = (2 * S_pad * (E + D) * itemsize          # resident K/V (2 bufs)
               + 2 * tL * (E + D) * itemsize           # q / V-out blocks
               + 2 * tL * S_pad * itemsize             # A out block (2 bufs)
               + (2 * tL * S_pad if has_mask else 0)
               + 4 * tL * S_pad * 4)                   # live f32 temporaries
        vmem_limit = int(min(cap, max(32 << 20, est + (4 << 20))))
        v_flat, a_flat = _fullrow_call(qp, kp, vp, maskp, scale=scale_val,
                                       causal=causal, tL=tL, H=H, S=S,
                                       a_dtype=queries.dtype,
                                       vmem_limit=vmem_limit)
        a_out = a_flat[:, :L, :S].reshape(B, H, L, S)
        v_flat = v_flat[:, :L, :]
    else:
        a_out = None
        tL = _tile_L(256)
        L_pad = _round_up(L, tL)
        tS = min(_round_up(S, 128), 512)
        S_pad = _round_up(S, tS)
        resident_est = (2 * S_pad * (E + D) * itemsize
                        + 2 * tL * (E + D) * itemsize
                        + (2 * tL * S_pad if has_mask else 0)
                        + 4 * tL * tS * 4
                        + tL * (D + 8) * 4)
        if (not _force_stream) and resident_est <= cap:
            # -------- K/V resident per (b, h), in-kernel S loop --------
            qp = _pad23(q, L_pad, None)
            kp = _pad23(k, S_pad, None)
            vp = _pad23(v, S_pad, None)
            maskp = _pad23(mask_bls, L_pad, S_pad, fill=1) if has_mask else None
            vmem_limit = int(min(cap, max(32 << 20, resident_est + (4 << 20))))
            v_flat = _flash_resident_call(qp, kp, vp, maskp, scale=scale_val,
                                          causal=causal, tL=tL, tS=tS, H=H,
                                          S=S, bf16_p=bf16_p,
                                          vmem_limit=vmem_limit)
        else:
            # -------- streaming 3-D grid fallback (very long S) --------
            tS = min(_round_up(S, 128), 1024)
            S_pad = _round_up(S, tS)
            qp = _pad23(q, L_pad, None)
            kp = _pad23(k, S_pad, None)
            vp = _pad23(v, S_pad, None)
            maskp = _pad23(mask_bls, L_pad, S_pad, fill=1) if has_mask else None
            stream_est = (2 * (tL * E + tS * (E + D) + tL * D) * itemsize
                          + (2 * tL * tS if has_mask else 0)
                          + 4 * tL * tS * 4 + tL * (D + 8) * 4)
            vmem_limit = int(min(cap, max(32 << 20, stream_est + (4 << 20))))
            v_flat = _flash_stream_call(qp, kp, vp, maskp, scale=scale_val,
                                        causal=causal, tL=tL, tS=tS, H=H,
                                        S=S, bf16_p=bf16_p,
                                        vmem_limit=vmem_limit)
        v_flat = v_flat[:, :L, :]

    v_out = jnp.transpose(v_flat.reshape(B, H, L, D), (0, 2, 1, 3))  # [B,L,H,D]
    return v_out, a_out


# --------------------------------------------------------------------------
# Pure-JAX reference
# --------------------------------------------------------------------------
def _reference(queries, keys, values, attn_mask=None, *, mask_flag=True,
               scale=None):
    B, L, H, E = queries.shape
    _, S, _, D = values.shape
    scale_val = scale if scale is not None else 1.0 / sqrt(E)
    scores = jnp.einsum('blhe,bshe->bhls', queries.astype(jnp.float32),
                        keys.astype(jnp.float32)) * scale_val
    if mask_flag:
        if attn_mask is None:
            row = lax.broadcasted_iota(jnp.int32, (L, S), 0)
            col = lax.broadcasted_iota(jnp.int32, (L, S), 1)
            mask = (col > row)[None, None]
        else:
            am = jnp.asarray(attn_mask).astype(bool)
            if am.ndim == 2:
                am = am[None, None]
            elif am.ndim == 3:
                am = am[:, None]
            mask = jnp.broadcast_to(am, (B, 1, L, S))
        scores = jnp.where(mask, -1e30, scores)
    a = jax.nn.softmax(scores, axis=-1)
    vv = jnp.einsum('bhls,bshd->blhd', a, values.astype(jnp.float32))
    return vv.astype(queries.dtype), a


if __name__ == "__main__":
    TOL = dict(atol=5e-3, rtol=5e-3)

    B, L, S, H, E, D = 2, 8, 8, 4, 32, 32
    key = jax.random.PRNGKey(0)
    kq, kk, kv, km = jax.random.split(key, 4)
    queries = jax.random.normal(kq, (B, L, H, E), dtype=jnp.float32)
    keys_in = jax.random.normal(kk, (B, S, H, E), dtype=jnp.float32)
    values = jax.random.normal(kv, (B, S, H, D), dtype=jnp.float32)

    # 1) causal, output_attention=True (full-row kernel, exact A)
    v_out, a_out = full_attention(queries, keys_in, values, None,
                                  mask_flag=True, output_attention=True)
    jax.block_until_ready(v_out); jax.block_until_ready(a_out)
    v_ref, a_ref = _reference(queries, keys_in, values, None, mask_flag=True)
    assert jnp.allclose(v_out, v_ref, **TOL), "V mismatch (causal, with A)"
    assert jnp.allclose(a_out, a_ref, **TOL), "A mismatch (causal)"

    # 2) causal, output_attention=False (resident flash kernel)
    v_out2, a_none = full_attention(queries, keys_in, values, None,
                                    mask_flag=True, output_attention=False)
    jax.block_until_ready(v_out2)
    assert a_none is None
    assert jnp.allclose(v_out2, v_ref, **TOL), "V mismatch (causal, flash)"

    # 3) user-supplied mask (int8 mask stream); keep col 0 unmasked per row
    user_mask = jax.random.bernoulli(km, 0.3, (B, 1, L, S))
    user_mask = user_mask.at[:, :, :, 0].set(False)
    v_out3, _ = full_attention(queries, keys_in, values, user_mask,
                               mask_flag=True, output_attention=False)
    jax.block_until_ready(v_out3)
    v_ref3, _ = _reference(queries, keys_in, values, user_mask, mask_flag=True)
    assert jnp.allclose(v_out3, v_ref3, **TOL), "V mismatch (user mask)"

    # 4) mask_flag=False (no mask operand; only padded-column masking)
    v_out4, _ = full_attention(queries, keys_in, values, None,
                               mask_flag=False, output_attention=False)
    jax.block_until_ready(v_out4)
    v_ref4, _ = _reference(queries, keys_in, values, None, mask_flag=False)
    assert jnp.allclose(v_out4, v_ref4, **TOL), "V mismatch (no mask)"

    # 5) medium causal case: resident path (multi L-block, multi S-chunk) and
    #    the forced streaming fallback (clamped causal K/V DMA, tile skip).
    B2, L2, H2, E2, D2 = 1, 2048, 2, 64, 64
    k2 = jax.random.split(jax.random.PRNGKey(1), 3)
    q2 = jax.random.normal(k2[0], (B2, L2, H2, E2), dtype=jnp.float32)
    kk2 = jax.random.normal(k2[1], (B2, L2, H2, E2), dtype=jnp.float32)
    vv2 = jax.random.normal(k2[2], (B2, L2, H2, D2), dtype=jnp.float32)
    v_ref5, _ = _reference(q2, kk2, vv2, None, mask_flag=True)
    v_out5, _ = full_attention(q2, kk2, vv2, None, mask_flag=True,
                               output_attention=False)
    jax.block_until_ready(v_out5)
    assert jnp.allclose(v_out5, v_ref5, **TOL), "V mismatch (resident, 2k)"
    v_out6, _ = full_attention(q2, kk2, vv2, None, mask_flag=True,
                               output_attention=False, _force_stream=True)
    jax.block_until_ready(v_out6)
    assert jnp.allclose(v_out6, v_ref5, **TOL), "V mismatch (stream, 2k)"

    # 6) awkward (non-aligned) shapes exercise the padding paths
    B3, L3, H3, E3, D3 = 1, 10, 2, 32, 32
    k3 = jax.random.split(jax.random.PRNGKey(2), 4)
    q3 = jax.random.normal(k3[0], (B3, L3, H3, E3), dtype=jnp.float32)
    kk3 = jax.random.normal(k3[1], (B3, L3, H3, E3), dtype=jnp.float32)
    vv3 = jax.random.normal(k3[2], (B3, L3, H3, D3), dtype=jnp.float32)
    m3 = jax.random.bernoulli(k3[3], 0.3, (B3, 1, L3, L3))
    m3 = m3.at[:, :, :, 0].set(False)
    v_out7, a_out7 = full_attention(q3, kk3, vv3, None, mask_flag=True,
                                    output_attention=True)
    jax.block_until_ready(v_out7)
    v_ref7, a_ref7 = _reference(q3, kk3, vv3, None, mask_flag=True)
    assert jnp.allclose(v_out7, v_ref7, **TOL), "V mismatch (padded, fullrow)"
    assert jnp.allclose(a_out7, a_ref7, **TOL), "A mismatch (padded, fullrow)"
    v_out8, _ = full_attention(q3, kk3, vv3, m3, mask_flag=True,
                               output_attention=False)
    jax.block_until_ready(v_out8)
    v_ref8, _ = _reference(q3, kk3, vv3, m3, mask_flag=True)
    assert jnp.allclose(v_out8, v_ref8, **TOL), "V mismatch (padded, mask)"

    # 7) bf16 inputs: native-dtype MXU feed + bf16 exp (EUP) path
    B4, L4, H4, E4, D4 = 1, 256, 2, 64, 64
    k4 = jax.random.split(jax.random.PRNGKey(3), 3)
    q4 = jax.random.normal(k4[0], (B4, L4, H4, E4), dtype=jnp.bfloat16)
    kk4 = jax.random.normal(k4[1], (B4, L4, H4, E4), dtype=jnp.bfloat16)
    vv4 = jax.random.normal(k4[2], (B4, L4, H4, D4), dtype=jnp.bfloat16)
    v_out9, _ = full_attention(q4, kk4, vv4, None, mask_flag=True,
                               output_attention=False)
    jax.block_until_ready(v_out9)
    v_ref9, _ = _reference(q4, kk4, vv4, None, mask_flag=True)
    assert jnp.allclose(v_out9.astype(jnp.float32),
                        v_ref9.astype(jnp.float32),
                        atol=6e-2, rtol=6e-2), "V mismatch (bf16)"

    print("KERNEL_OK")
</pallas_src>

<mosaic_0001>
module attributes {stable_mosaic.version = 11 : i64} {
  func.func @_fullrow_kernel(%arg0: i32, %arg1: i32, %arg2: memref<1x8x32xf32, #tpu.memory_space<vmem>>, %arg3: memref<1x128x32xf32, #tpu.memory_space<vmem>>, %arg4: memref<1x128x32xf32, #tpu.memory_space<vmem>>, %arg5: memref<1x8x32xf32, #tpu.memory_space<vmem>>, %arg6: memref<1x8x128xf32, #tpu.memory_space<vmem>>) attributes {dimension_semantics = [#tpu.dimension_semantics<parallel>, #tpu.dimension_semantics<parallel>], iteration_bounds = array<i64: 8, 1>, scalar_prefetch = 0 : i64, scratch_operands = 0 : i64, tpu.core_type = #tpu.core_type<tc>, window_params = [{transform_indices = @transform_0, window_bounds = array<i64: 1, 8, 32>}, {transform_indices = @transform_1, window_bounds = array<i64: 1, 128, 32>}, {transform_indices = @transform_2, window_bounds = array<i64: 1, 128, 32>}, {transform_indices = @transform_3, window_bounds = array<i64: 1, 8, 32>}, {transform_indices = @transform_4, window_bounds = array<i64: 1, 8, 128>}]} {
    %c0 = arith.constant 0 : index
    %c0_0 = arith.constant 0 : index
    %c0_1 = arith.constant 0 : index
    %0 = vector.load %arg2[%c0, %c0_0, %c0_1] : memref<1x8x32xf32, #tpu.memory_space<vmem>>, vector<1x8x32xf32>
    %1 = vector.shape_cast %0 : vector<1x8x32xf32> to vector<8x32xf32>
    %cst = arith.constant 0.176776692 : f32
    %2 = vector.broadcast %cst : f32 to vector<8x32xf32>
    %3 = arith.mulf %1, %2 : vector<8x32xf32>
    %c0_2 = arith.constant 0 : index
    %c0_3 = arith.constant 0 : index
    %c0_4 = arith.constant 0 : index
    %4 = vector.load %arg3[%c0_2, %c0_3, %c0_4] : memref<1x128x32xf32, #tpu.memory_space<vmem>>, vector<1x128x32xf32>
    %5 = vector.shape_cast %4 : vector<1x128x32xf32> to vector<128x32xf32>
    %c0_5 = arith.constant 0 : index
    %c0_6 = arith.constant 0 : index
    %c0_7 = arith.constant 0 : index
    %6 = vector.load %arg4[%c0_5, %c0_6, %c0_7] : memref<1x128x32xf32, #tpu.memory_space<vmem>>, vector<1x128x32xf32>
    %7 = vector.shape_cast %6 : vector<1x128x32xf32> to vector<128x32xf32>
    %cst_8 = arith.constant dense<0.000000e+00> : vector<8x128xf32>
    %8 = tpu.matmul %3, %5, %cst_8 {dimension_numbers = #tpu.dot_dimension_numbers<[1], [1], [0], [0], [0, 0, 1, 0], [], []>} : vector<8x32xf32>, vector<128x32xf32>, vector<8x128xf32> -> vector<8x128xf32>
    %c8_i32 = arith.constant 8 : i32
    %9 = arith.muli %arg1, %c8_i32 : i32
    %10 = tpu.iota {dimensions = array<i32: 0>} : vector<8x128xi32>
    %11 = vector.broadcast %9 : i32 to vector<8x128xi32>
    %12 = arith.addi %11, %10 : vector<8x128xi32>
    %13 = tpu.iota {dimensions = array<i32: 1>} : vector<8x128xi32>
    %14 = arith.cmpi sgt, %13, %12 : vector<8x128xi32>
    %c8_i32_9 = arith.constant 8 : i32
    %15 = vector.broadcast %c8_i32_9 : i32 to vector<8x128xi32>
    %16 = arith.cmpi sge, %13, %15 : vector<8x128xi32>
    %17 = arith.ori %14, %16 : vector<8x128xi1>
    %cst_10 = arith.constant -1.000000e+30 : f32
    %18 = vector.broadcast %cst_10 : f32 to vector<8x128xf32>
    %19 = arith.select %17, %18, %8 : vector<8x128xi1>, vector<8x128xf32>
    %cst_11 = arith.constant dense<0xFF800000> : vector<8xf32>
    %20 = vector.multi_reduction <maximumf>, %19, %cst_11 [1] : vector<8x128xf32> to vector<8xf32>
    %21 = vector.shape_cast %20 : vector<8xf32> to vector<8x1xf32>
    %22 = vector.broadcast %21 : vector<8x1xf32> to vector<8x128xf32>
    %23 = arith.subf %19, %22 : vector<8x128xf32>
    %24 = math.exp %23 : vector<8x128xf32>
    %cst_12 = arith.constant dense<0.000000e+00> : vector<8xf32>
    %25 = vector.multi_reduction <add>, %24, %cst_12 [1] : vector<8x128xf32> to vector<8xf32>
    %26 = vector.shape_cast %25 : vector<8xf32> to vector<8x1xf32>
    %27 = vector.broadcast %26 : vector<8x1xf32> to vector<8x128xf32>
    %28 = arith.divf %24, %27 : vector<8x128xf32>
    %cst_13 = arith.constant dense<0.000000e+00> : vector<8x32xf32>
    %29 = tpu.matmul %28, %7, %cst_13 {dimension_numbers = #tpu.dot_dimension_numbers<[1], [0], [0], [1], [0, 0, 1, 1], [], []>} : vector<8x128xf32>, vector<128x32xf32>, vector<8x32xf32> -> vector<8x32xf32>
    %c0_14 = arith.constant 0 : index
    %c0_15 = arith.constant 0 : index
    %c0_16 = arith.constant 0 : index
    %30 = vector.load %arg5[%c0_14, %c0_15, %c0_16] : memref<1x8x32xf32, #tpu.memory_space<vmem>>, vector<1x8x32xf32>
    %31 = vector.shape_cast %30 : vector<1x8x32xf32> to vector<8x32xf32>
    %32 = vector.shape_cast %29 : vector<8x32xf32> to vector<1x8x32xf32>
    tpu.vector_store %arg5[%c0_14, %c0_15, %c0_16], %32 {strides = array<i32>} : memref<1x8x32xf32, #tpu.memory_space<vmem>>, vector<1x8x32xf32>,
    %c0_17 = arith.constant 0 : index
    %c0_18 = arith.constant 0 : index
    %c0_19 = arith.constant 0 : index
    %33 = vector.load %arg6[%c0_17, %c0_18, %c0_19] : memref<1x8x128xf32, #tpu.memory_space<vmem>>, vector<1x8x128xf32>
    %34 = vector.shape_cast %33 : vector<1x8x128xf32> to vector<8x128xf32>
    %35 = vector.shape_cast %28 : vector<8x128xf32> to vector<1x8x128xf32>
    tpu.vector_store %arg6[%c0_17, %c0_18, %c0_19], %35 {strides = array<i32>} : memref<1x8x128xf32, #tpu.memory_space<vmem>>, vector<1x8x128xf32>,
    return
  }
  func.func @transform_0(%arg0: i32, %arg1: i32) -> (i32, i32, i32) {
    %c0_i32 = arith.constant 0 : i32
    %c0_i32_0 = arith.constant 0 : i32
    return %arg0, %arg1, %c0_i32 : i32, i32, i32
  }
  func.func @transform_1(%arg0: i32, %arg1: i32) -> (i32, i32, i32) {
    %c0_i32 = arith.constant 0 : i32
    %c0_i32_0 = arith.constant 0 : i32
    %c0_i32_1 = arith.constant 0 : i32
    return %arg0, %c0_i32, %c0_i32_0 : i32, i32, i32
  }
  func.func @transform_2(%arg0: i32, %arg1: i32) -> (i32, i32, i32) {
    %c0_i32 = arith.constant 0 : i32
    %c0_i32_0 = arith.constant 0 : i32
    %c0_i32_1 = arith.constant 0 : i32
    return %arg0, %c0_i32, %c0_i32_0 : i32, i32, i32
  }
  func.func @transform_3(%arg0: i32, %arg1: i32) -> (i32, i32, i32) {
    %c0_i32 = arith.constant 0 : i32
    %c0_i32_0 = arith.constant 0 : i32
    return %arg0, %arg1, %c0_i32 : i32, i32, i32
  }
  func.func @transform_4(%arg0: i32, %arg1: i32) -> (i32, i32, i32) {
    %c0_i32 = arith.constant 0 : i32
    %c0_i32_0 = arith.constant 0 : i32
    return %arg0, %arg1, %c0_i32 : i32, i32, i32
  }
}

</mosaic_0001>

<llo_original>
// kernel: tpu_custom_call.1
$region0: #{tpu_custom_call.1}
  #allocation0 [shape = 'u32[]', space=smem, size = 0x4, offset = 0x4, fixed_abs, tag = 'smem constant byte address 0x4 - core index']
  #allocation1 [shape = 'u32[144,128]{1,0:T(1,128)}', space=vmem, size = 0x12000, scoped, tag = 'internal scratch']
  %s0 = inlined_call_operand.vmem [shape: f32[8,8,32], index: 0, kind: input, shape index: {}]
  %s1 = inlined_call_operand.vmem [shape: f32[8,128,32], index: 1, kind: input, shape index: {}]
  %s2 = inlined_call_operand.vmem [shape: f32[8,128,32], index: 2, kind: input, shape index: {}]
  %s3 = inlined_call_operand.hbm [shape: f32[8,8,32], index: 3, kind: output, shape index: {0}]
  %s4 = inlined_call_operand.hbm [shape: f32[8,8,128], index: 4, kind: output, shape index: {1}]
  %5 = xla_tuple %s3, %s4
  %s6 = sld [smem:[#allocation0]]
  $region53: #{tpu_custom_call.1} parent=0
    _
  %s8 = ssub.s32 1, %s6
  %s9 = scalar_select 0, %s8, %s6
  $region1: #{tpu_custom_call.1} parent=0
    #allocation2 [shape = 'u8[8192]{0}', space=vmem, size = 0x2000, scoped, tag = 'output window, operand 0']
    #allocation3 [shape = 's32[2]{0}', space=sflag, size = 0x8, scoped, tag = 'scoped memory for tpu_custom_call.1']
    #allocation4 [shape = 'u8[8192]{0}', space=vmem, size = 0x2000, scoped, tag = 'output window, operand 1']
    #allocation5 [shape = 's32[2]{0}', space=sflag, size = 0x8, scoped, tag = 'scoped memory for tpu_custom_call.1']
    %10 = vsyncpa [#allocation3], 0
    %s11 = scalar_lea.sflag [#allocation3], 1
    %12 = vsyncpa %s11, 0
    %13 = vsyncpa [#allocation5], 0
    %s14 = scalar_lea.sflag [#allocation5], 1
    %15 = vsyncpa %s14, 0
    loop: start=0, step=1, limit=10
    $region2: #{tpu_custom_call.1} parent=1 // loop_pre_header
      _
    $region3: #{tpu_custom_call.1} parent=1 // loop_header
      %s17 = sphi 0, %s21
      %p18 = scmp.ge.s32.totalorder %s17, 10
      %s24 = sphi 0, %s36
      %s25 = sphi 0, %s32
      %s26 = sphi 0, %s24
      %s27 = sphi 0, %s25
      %s28 = sphi 0, %s26
      %s29 = sphi 0, %s27
      %s41 = sphi 0, %s43
      %s44 = sphi 0, %s41
      %s45 = sphi 0, %s44
      %s61 = sphi 0, %s45
      %s67 = sphi 0, %s69
      %s70 = sphi 0, %s67
      %s71 = sphi 0, %s70
      %s87 = sphi 0, %s71
      %s93 = sphi 0, %s95
      %s96 = sphi 0, %s93
      %s97 = sphi 0, %s96
      %s113 = sphi 0, %s97
      %s121 = sphi 0, %s123
      %s124 = sphi 0, %s121
      %s125 = sphi 0, %s124
      %s141 = sphi 0, %s125
      %s149 = sphi 0, %s151
      %s152 = sphi 0, %s149
      %s153 = sphi 0, %s152
      %s169 = sphi 0, %s153
    $region4: #{tpu_custom_call.1} parent=1 // loop_header_branch
      %20 = sbr.rel (%p18) target = $region8
    $region5: #{tpu_custom_call.1} parent=1 // loop_body
      %s22 = ssub.s32 %s17, 1
      %s23 = ssub.s32 %s17, 2
      %s30 = sadd.s32 1, %s25
      %p31 = scmp.ge.s32.totalorder %s30, 1
      %s32 = scalar_select %p31, 0, %s30
      %s33 = sadd.s32 1, %s24
      %s34 = scalar_select %p31, %s33, %s24
      %p35 = scmp.ge.s32.totalorder %s34, 8
      %s36 = scalar_select %p35, 0, %s34
      %s37 = ssub.s32 %s24, %s36
      %s38 = ssub.s32 %s25, %s32
      %s39 = sor.u32 %s37, %s38
      %p40 = scmp.eq.s32.totalorder %s39, 0
      %s42 = sadd.s32 %s41, 1
      %s43 = scalar_select %p40, %s41, %s42
      %p46 = pneg %p40
      %p47 = scmp.eq.s32.totalorder %s17, 7
      %p48 = por %p46, %p47
      %p49 = scmp.ne.s32.totalorder %s41, %s44
      %p50 = scmp.eq.s32.totalorder %s17, 0
      %p51 = por %p49, %p50
      %p52 = scmp.ne.s32.totalorder %s41, %s44
      %p53 = scmp.eq.s32.totalorder %s22, 7
      %p54 = por %p52, %p53
      %p55 = scmp.ne.s32.totalorder %s44, %s45
      %p56 = scmp.eq.s32.totalorder %s22, 0
      %p57 = por %p55, %p56
      %p58 = scmp.ne.s32.totalorder %s44, %s45
      %p59 = scmp.eq.s32.totalorder %s23, 7
      %p60 = por %p58, %p59
      %p62 = scmp.ne.s32.totalorder %s45, %s61
      %p63 = scmp.eq.s32.totalorder %s23, 0
      %p64 = por %p62, %p63
      %s65 = ssub.s32 %s24, %s36
      %p66 = scmp.eq.s32.totalorder %s65, 0
      %s68 = sadd.s32 %s67, 1
      %s69 = scalar_select %p66, %s67, %s68
      %p72 = pneg %p66
      %p73 = scmp.eq.s32.totalorder %s17, 7
      %p74 = por %p72, %p73
      %p75 = scmp.ne.s32.totalorder %s67, %s70
      %p76 = scmp.eq.s32.totalorder %s17, 0
      %p77 = por %p75, %p76
      %p78 = scmp.ne.s32.totalorder %s67, %s70
      %p79 = scmp.eq.s32.totalorder %s22, 7
      %p80 = por %p78, %p79
      %p81 = scmp.ne.s32.totalorder %s70, %s71
      %p82 = scmp.eq.s32.totalorder %s22, 0
      %p83 = por %p81, %p82
      %p84 = scmp.ne.s32.totalorder %s70, %s71
      %p85 = scmp.eq.s32.totalorder %s23, 7
      %p86 = por %p84, %p85
      %p88 = scmp.ne.s32.totalorder %s71, %s87
      %p89 = scmp.eq.s32.totalorder %s23, 0
      %p90 = por %p88, %p89
      %s91 = ssub.s32 %s24, %s36
      %p92 = scmp.eq.s32.totalorder %s91, 0
      %s94 = sadd.s32 %s93, 1
      %s95 = scalar_select %p92, %s93, %s94
      %p98 = pneg %p92
      %p99 = scmp.eq.s32.totalorder %s17, 7
      %p100 = por %p98, %p99
      %p101 = scmp.ne.s32.totalorder %s93, %s96
      %p102 = scmp.eq.s32.totalorder %s17, 0
      %p103 = por %p101, %p102
      %p104 = scmp.ne.s32.totalorder %s93, %s96
      %p105 = scmp.eq.s32.totalorder %s22, 7
      %p106 = por %p104, %p105
      %p107 = scmp.ne.s32.totalorder %s96, %s97
      %p108 = scmp.eq.s32.totalorder %s22, 0
      %p109 = por %p107, %p108
      %p110 = scmp.ne.s32.totalorder %s96, %s97
      %p111 = scmp.eq.s32.totalorder %s23, 7
      %p112 = por %p110, %p111
      %p114 = scmp.ne.s32.totalorder %s97, %s113
      %p115 = scmp.eq.s32.totalorder %s23, 0
      %p116 = por %p114, %p115
      %s117 = ssub.s32 %s24, %s36
      %s118 = ssub.s32 %s25, %s32
      %s119 = sor.u32 %s117, %s118
      %p120 = scmp.eq.s32.totalorder %s119, 0
      %s122 = sadd.s32 %s121, 1
      %s123 = scalar_select %p120, %s121, %s122
      %p126 = pneg %p120
      %p127 = scmp.eq.s32.totalorder %s17, 7
      %p128 = por %p126, %p127
      %p129 = scmp.ne.s32.totalorder %s121, %s124
      %p130 = scmp.eq.s32.totalorder %s17, 0
      %p131 = por %p129, %p130
      %p132 = scmp.ne.s32.totalorder %s121, %s124
      %p133 = scmp.eq.s32.totalorder %s22, 7
      %p134 = por %p132, %p133
      %p135 = scmp.ne.s32.totalorder %s124, %s125
      %p136 = scmp.eq.s32.totalorder %s22, 0
      %p137 = por %p135, %p136
      %p138 = scmp.ne.s32.totalorder %s124, %s125
      %p139 = scmp.eq.s32.totalorder %s23, 7
      %p140 = por %p138, %p139
      %p142 = scmp.ne.s32.totalorder %s125, %s141
      %p143 = scmp.eq.s32.totalorder %s23, 0
      %p144 = por %p142, %p143
      %s145 = ssub.s32 %s24, %s36
      %s146 = ssub.s32 %s25, %s32
      %s147 = sor.u32 %s145, %s146
      %p148 = scmp.eq.s32.totalorder %s147, 0
      %s150 = sadd.s32 %s149, 1
      %s151 = scalar_select %p148, %s149, %s150
      %p154 = pneg %p148
      %p155 = scmp.eq.s32.totalorder %s17, 7
      %p156 = por %p154, %p155
      %p157 = scmp.ne.s32.totalorder %s149, %s152
      %p158 = scmp.eq.s32.totalorder %s17, 0
      %p159 = por %p157, %p158
      %p160 = scmp.ne.s32.totalorder %s149, %s152
      %p161 = scmp.eq.s32.totalorder %s22, 7
      %p162 = por %p160, %p161
      %p163 = scmp.ne.s32.totalorder %s152, %s153
      %p164 = scmp.eq.s32.totalorder %s22, 0
      %p165 = por %p163, %p164
      %p166 = scmp.ne.s32.totalorder %s152, %s153
      %p167 = scmp.eq.s32.totalorder %s23, 7
      %p168 = por %p166, %p167
      %p170 = scmp.ne.s32.totalorder %s153, %s169
      %p171 = scmp.eq.s32.totalorder %s23, 0
      %p172 = por %p170, %p171
      %p173 = scmp.le.s32.totalorder 1, %s17
      %p174 = scmp.lt.s32.totalorder %s17, 9
      %p175 = pnand %p173, %p174
      %p176 = pneg %p175
      // Predicated region
      $region9: #{tpu_custom_call.1} parent=5 // pred_check
        _
      $region10: #{tpu_custom_call.1} parent=5 // pred_check_branch
        %178 = sbr.rel (%p175) target = $region12
      $region11: #{tpu_custom_call.1} parent=5 // pred_region
        %s179 = ssub.s32 %s17, 1
      $region12: #{tpu_custom_call.1} parent=5 // pred_fallthru
        _
      %p180 = scmp.lt.s32.totalorder %s17, 8
      // Predicated region
      $region13: #{tpu_custom_call.1} parent=5 // pred_check
        %p181 = pneg %p180
      $region14: #{tpu_custom_call.1} parent=5 // pred_check_branch
        %183 = sbr.rel (%p181) target = $region16
      $region15: #{tpu_custom_call.1} parent=5 // pred_region
        // Predicated region
        $region17: #{tpu_custom_call.1} parent=15 // pred_check
          %p184 = pneg %p51
        $region18: #{tpu_custom_call.1} parent=15 // pred_check_branch
          %186 = sbr.rel (%p184) target = $region20
        $region19: #{tpu_custom_call.1} parent=15 // pred_region
          %p187 = scmp.lt.s32.totalorder %s24, 7
          %s188 = scalar_select %p187, %s24, 7
          %p189 = scmp.lt.s32.totalorder %s25, 0
          %s190 = scalar_select %p189, %s25, 0
          %s191 = sadd.s32 %s190, %s188
          %s192 = smul.addr %s191, 8
          %s193 = scalar_lea.vmem %s0, %s192
        $region20: #{tpu_custom_call.1} parent=15 // pred_fallthru
          _
        // Predicated region
        $region21: #{tpu_custom_call.1} parent=15 // pred_check
          %p194 = pneg %p77
        $region22: #{tpu_custom_call.1} parent=15 // pred_check_branch
          %196 = sbr.rel (%p194) target = $region24
        $region23: #{tpu_custom_call.1} parent=15 // pred_region
          %p197 = scmp.lt.s32.totalorder %s24, 7
          %s198 = scalar_select %p197, %s24, 7
          %s199 = smul.addr %s198, 16
          %s200 = smul.addr %s199, 8
          %s201 = scalar_lea.vmem %s1, %s200
        $region24: #{tpu_custom_call.1} parent=15 // pred_fallthru
          _
        // Predicated region
        $region25: #{tpu_custom_call.1} parent=15 // pred_check
          %p202 = pneg %p103
        $region26: #{tpu_custom_call.1} parent=15 // pred_check_branch
          %204 = sbr.rel (%p202) target = $region28
        $region27: #{tpu_custom_call.1} parent=15 // pred_region
          %p205 = scmp.lt.s32.totalorder %s24, 7
          %s206 = scalar_select %p205, %s24, 7
          %s207 = smul.addr %s206, 16
          %s208 = smul.addr %s207, 8
          %s209 = scalar_lea.vmem %s2, %s208
        $region28: #{tpu_custom_call.1} parent=15 // pred_fallthru
          _
      $region16: #{tpu_custom_call.1} parent=5 // pred_fallthru
        _
      %p210 = scmp.le.s32.totalorder 1, %s17
      %p211 = scmp.lt.s32.totalorder %s17, 9
      %p212 = pnand %p210, %p211
      %p213 = pneg %p212
      // Predicated region
      $region29: #{tpu_custom_call.1} parent=5 // pred_check
        _
      $region30: #{tpu_custom_call.1} parent=5 // pred_check_branch
        %215 = sbr.rel (%p212) target = $region32
      $region31: #{tpu_custom_call.1} parent=5 // pred_region
        %s216 = ssub.s32 %s17, 1
        %p217 = scmp.lt.s32.totalorder %s26, 7
        %s218 = scalar_select %p217, %s26, 7
        %p219 = scmp.lt.s32.totalorder %s27, 0
        %s220 = scalar_select %p219, %s27, 0
        %s221 = sadd.s32 %s220, %s218
        %s222 = smul.addr %s221, 8
        %s223 = scalar_lea.vmem %s0, %s222
        %p224 = pneg %p57
        %p225 = pneg %p54
        %p226 = scmp.lt.s32.totalorder %s26, 7
        %s227 = scalar_select %p226, %s26, 7
        %s228 = smul.addr %s227, 16
        %s229 = smul.addr %s228, 8
        %s230 = scalar_lea.vmem %s1, %s229
        %p231 = pneg %p83
        %p232 = pneg %p80
        %p233 = scmp.lt.s32.totalorder %s26, 7
        %s234 = scalar_select %p233, %s26, 7
        %s235 = smul.addr %s234, 16
        %s236 = smul.addr %s235, 8
        %s237 = scalar_lea.vmem %s2, %s236
        %p238 = pneg %p109
        %p239 = pneg %p106
        %p240 = pneg %p137
        %p241 = pneg %p134
        %s242 = sand.u32 %s124, 1
        %s243 = scalar_lea.sflag [#allocation3], %s242
        %s244 = sand.u32 %s124, 1
        %s245 = smul.addr %s244, 8
        %s246 = scalar_lea.vmem [#allocation2], %s245
        %p247 = pneg %p165
        %p248 = pneg %p162
        %s249 = sand.u32 %s152, 1
        %s250 = scalar_lea.sflag [#allocation5], %s249
        %s251 = sand.u32 %s152, 1
        %s252 = smul.addr %s251, 8
        %s253 = scalar_lea.vmem [#allocation4], %s252
        %p254 = scmp.lt.s32.totalorder %s26, 7
        %s255 = scalar_select %p254, %s26, 7
        %p256 = scmp.lt.s32.totalorder %s27, 0
        %s257 = scalar_select %p256, %s27, 0
        %s258 = sadd.s32 %s257, %s255
        %s259 = smul.addr %s258, 8
        %s260 = scalar_lea.vmem %s0, %s259
        %p261 = scmp.lt.s32.totalorder %s26, 7
        %s262 = scalar_select %p261, %s26, 7
        %s263 = smul.addr %s262, 16
        %s264 = smul.addr %s263, 8
        %s265 = scalar_lea.vmem %s1, %s264
        %p266 = scmp.lt.s32.totalorder %s26, 7
        %s267 = scalar_select %p266, %s26, 7
        %s268 = smul.addr %s267, 16
        %s269 = smul.addr %s268, 8
        %s270 = scalar_lea.vmem %s2, %s269
        %v271 = vld [vmem:[%s260] sm:$0xff]
        %v272 = vmul.f32 %v271, 0.17677669
        %v273 = vld [vmem:[%s265] sm:$0xff]
        %v274 = vld [vmem:[%s265 + $0x8] sm:$0xff]
        %v275 = vld [vmem:[%s265 + $0x10] sm:$0xff]
        %v276 = vld [vmem:[%s265 + $0x18] sm:$0xff]
        %v277 = vld [vmem:[%s265 + $0x20] sm:$0xff]
        %v278 = vld [vmem:[%s265 + $0x28] sm:$0xff]
        %v279 = vld [vmem:[%s265 + $0x30] sm:$0xff]
        %v280 = vld [vmem:[%s265 + $0x38] sm:$0xff]
        %v281 = vld [vmem:[%s265 + $0x40] sm:$0xff]
        %v282 = vld [vmem:[%s265 + $0x48] sm:$0xff]
        %v283 = vld [vmem:[%s265 + $0x50] sm:$0xff]
        %v284 = vld [vmem:[%s265 + $0x58] sm:$0xff]
        %v285 = vld [vmem:[%s265 + $0x60] sm:$0xff]
        %v286 = vld [vmem:[%s265 + $0x68] sm:$0xff]
        %v287 = vld [vmem:[%s265 + $0x70] sm:$0xff]
        %v288 = vld [vmem:[%s265 + $0x78] sm:$0xff]
        %v289 = vld [vmem:[%s270] sm:$0xff]
        %v290 = vld [vmem:[%s270 + $0x8] sm:$0xff]
        %v291 = vld [vmem:[%s270 + $0x10] sm:$0xff]
        %v292 = vld [vmem:[%s270 + $0x18] sm:$0xff]
        %v293 = vld [vmem:[%s270 + $0x20] sm:$0xff]
        %v294 = vld [vmem:[%s270 + $0x28] sm:$0xff]
        %v295 = vld [vmem:[%s270 + $0x30] sm:$0xff]
        %v296 = vld [vmem:[%s270 + $0x38] sm:$0xff]
        %v297 = vld [vmem:[%s270 + $0x40] sm:$0xff]
        %v298 = vld [vmem:[%s270 + $0x48] sm:$0xff]
        %v299 = vld [vmem:[%s270 + $0x50] sm:$0xff]
        %v300 = vld [vmem:[%s270 + $0x58] sm:$0xff]
        %v301 = vld [vmem:[%s270 + $0x60] sm:$0xff]
        %v302 = vld [vmem:[%s270 + $0x68] sm:$0xff]
        %v303 = vld [vmem:[%s270 + $0x70] sm:$0xff]
        %v304 = vld [vmem:[%s270 + $0x78] sm:$0xff]
        %vm305 = vcmask 261120
        %v307 = vsel %vm305, %v272, 0
        %v310 = vsel %vm305, %v273, 0
        %v313 = vsel %vm305, %v274, 0
        %v316 = vsel %vm305, %v275, 0
        %v319 = vsel %vm305, %v276, 0
        %v322 = vsel %vm305, %v277, 0
        %v325 = vsel %vm305, %v278, 0
        %v328 = vsel %vm305, %v279, 0
        %v331 = vsel %vm305, %v280, 0
        %v334 = vsel %vm305, %v281, 0
        %v337 = vsel %vm305, %v282, 0
        %v340 = vsel %vm305, %v283, 0
        %v343 = vsel %vm305, %v284, 0
        %v346 = vsel %vm305, %v285, 0
        %v349 = vsel %vm305, %v286, 0
        %v352 = vsel %vm305, %v287, 0
        %v355 = vsel %vm305, %v288, 0
        %357 = vmatprep.subr.mxu0 0.0
        %358 = vmatpush1.xpose.msra.mxu0 %v310
        %359 = vmatprep.subr.mxu0 0.0
        %360 = vmatpush1.xpose.msra.mxu0 %v313
        %361 = vmatprep.subr.mxu0 0.0
        %362 = vmatpush1.xpose.msra.mxu0 %v316
        %363 = vmatprep.subr.mxu0 0.0
        %364 = vmatpush1.xpose.msra.mxu0 %v319
        %365 = vmatprep.subr.mxu0 0.0
        %366 = vmatpush1.xpose.msra.mxu0 %v322
        %367 = vmatprep.subr.mxu0 0.0
        %368 = vmatpush1.xpose.msra.mxu0 %v325
        %369 = vmatprep.subr.mxu0 0.0
        %370 = vmatpush1.xpose.msra.mxu0 %v328
        %371 = vmatprep.subr.mxu0 0.0
        %372 = vmatpush1.xpose.msra.mxu0 %v331
        %373 = vmatprep.subr.mxu0 0.0
        %374 = vmatpush1.xpose.msra.mxu0 %v334
        %375 = vmatprep.subr.mxu0 0.0
        %376 = vmatpush1.xpose.msra.mxu0 %v337
        %377 = vmatprep.subr.mxu0 0.0
        %378 = vmatpush1.xpose.msra.mxu0 %v340
        %379 = vmatprep.subr.mxu0 0.0
        %380 = vmatpush1.xpose.msra.mxu0 %v343
        %381 = vmatprep.subr.mxu0 0.0
        %382 = vmatpush1.xpose.msra.mxu0 %v346
        %383 = vmatprep.subr.mxu0 0.0
        %384 = vmatpush1.xpose.msra.mxu0 %v349
        %385 = vmatprep.subr.mxu0 0.0
        %386 = vmatpush1.xpose.msra.mxu0 %v352
        %387 = vmatprep.subr.mxu0 0.0
        %388 = vmatpush1.xpose.msra.mxu0 %v355
        %389 = vmatprep.subr.mxu0 0.0
        %390 = vmatpush1.xpose.msra.mxu0 0.0
        %391 = vmatprep.subr.mxu0 0.0
        %392 = vmatpush1.xpose.msra.mxu0 0.0
        %393 = vmatprep.subr.mxu0 0.0
        %394 = vmatpush1.xpose.msra.mxu0 0.0
        %395 = vmatprep.subr.mxu0 0.0
        %396 = vmatpush1.xpose.msra.mxu0 0.0
        %397 = vmatprep.subr.mxu0 0.0
        %398 = vmatpush1.xpose.msra.mxu0 0.0
        %399 = vmatprep.subr.mxu0 0.0
        %400 = vmatpush1.xpose.msra.mxu0 0.0
        %401 = vmatprep.subr.mxu0 0.0
        %402 = vmatpush1.xpose.msra.mxu0 0.0
        %403 = vmatprep.subr.mxu0 0.0
        %404 = vmatpush1.xpose.msra.mxu0 0.0
        %405 = vmatprep.subr.mxu0 0.0
        %406 = vmatpush1.xpose.msra.mxu0 0.0
        %407 = vmatprep.subr.mxu0 0.0
        %408 = vmatpush1.xpose.msra.mxu0 0.0
        %409 = vmatprep.subr.mxu0 0.0
        %410 = vmatpush1.xpose.msra.mxu0 0.0
        %411 = vmatprep.subr.mxu0 0.0
        %412 = vmatpush1.xpose.msra.mxu0 0.0
        %413 = vmatprep.subr.mxu0 0.0
        %414 = vmatpush1.xpose.msra.mxu0 0.0
        %415 = vmatprep.subr.mxu0 0.0
        %416 = vmatpush1.xpose.msra.mxu0 0.0
        %417 = vmatprep.subr.mxu0 0.0
        %418 = vmatpush1.xpose.msra.mxu0 0.0
        %419 = vmatprep.subr.mxu0 0.0
        %420 = vmatpush1.xpose.msra.mxu0 0.0
        %421 = vmatprep.mubr.f32.mxu0 0.0
        %422 = vmatmul.mubr.f32.gmra.mrb[0].mxu0 %v307
        %v423 = vpop.f32.mrb[0].mxu0
        %v424 = vadd.f32 0.0, %v423
        %v425 = vpop.f32.mrb[0].mxu0
        %426 = vdwg.mxu0
        %s427 = smul.u32 %s27, 8
        %v428 = vlaneseq
        %v429 = vshrl.u32 %v428, 7
        %v430 = vstv %s427
        %v431 = vadd.s32 %v430, %v429
        %v432 = vlaneseq
        %v433 = vand.u32 %v432, 127
        %vm434 = vcmp.gt.s32.totalorder %v433, %v431
        %vm435 = vcmp.ge.s32.totalorder %v433, 8
        %vm436 = vmor %vm434, %vm435
        %v437 = vsel %vm436, -1e+30, %v424
        %438 = vmax.xlane.f32.xlu0 %v437
        %v439 = vpop.xlane.xlu0 %438
        %v440 = vsub.f32 %v437, %v439
        %v441 = vmul.f32 %v440, 1.442695
        %v442 = vpow.pop %v441
        %443 = vadd.xlane.f32.xlu0 %v442
        %v444 = vpop.xlane.xlu0 %443
        %v445 = vrcp.pop %v444
        %v446 = vmul.f32 %v442, %v445
        %447 = vmatprep.subr.mxu0 0.0
        %448 = vmatpush1.msra.mxu0 %v289
        %449 = vmatprep.subr.mxu0 0.0
        %450 = vmatpush1.msra.mxu0 %v290
        %451 = vmatprep.subr.mxu0 0.0
        %452 = vmatpush1.msra.mxu0 %v291
        %453 = vmatprep.subr.mxu0 0.0
        %454 = vmatpush1.msra.mxu0 %v292
        %455 = vmatprep.subr.mxu0 0.0
        %456 = vmatpush1.msra.mxu0 %v293
        %457 = vmatprep.subr.mxu0 0.0
        %458 = vmatpush1.msra.mxu0 %v294
        %459 = vmatprep.subr.mxu0 0.0
        %460 = vmatpush1.msra.mxu0 %v295
        %461 = vmatprep.subr.mxu0 0.0
        %462 = vmatpush1.msra.mxu0 %v296
        %463 = vmatprep.subr.mxu0 0.0
        %464 = vmatpush1.msra.mxu0 %v297
        %465 = vmatprep.subr.mxu0 0.0
        %466 = vmatpush1.msra.mxu0 %v298
        %467 = vmatprep.subr.mxu0 0.0
        %468 = vmatpush1.msra.mxu0 %v299
        %469 = vmatprep.subr.mxu0 0.0
        %470 = vmatpush1.msra.mxu0 %v300
        %471 = vmatprep.subr.mxu0 0.0
        %472 = vmatpush1.msra.mxu0 %v301
        %473 = vmatprep.subr.mxu0 0.0
        %474 = vmatpush1.msra.mxu0 %v302
        %475 = vmatprep.subr.mxu0 0.0
        %476 = vmatpush1.msra.mxu0 %v303
        %477 = vmatprep.subr.mxu0 0.0
        %478 = vmatpush1.msra.mxu0 %v304
        %479 = vmatprep.subr.mxu0 0.0
        %480 = vmatpush1.msra.mxu0 0.0
        %481 = vmatprep.subr.mxu0 0.0
        %482 = vmatpush1.msra.mxu0 0.0
        %483 = vmatprep.subr.mxu0 0.0
        %484 = vmatpush1.msra.mxu0 0.0
        %485 = vmatprep.subr.mxu0 0.0
        %486 = vmatpush1.msra.mxu0 0.0
        %487 = vmatprep.subr.mxu0 0.0
        %488 = vmatpush1.msra.mxu0 0.0
        %489 = vmatprep.subr.mxu0 0.0
        %490 = vmatpush1.msra.mxu0 0.0
        %491 = vmatprep.subr.mxu0 0.0
        %492 = vmatpush1.msra.mxu0 0.0
        %493 = vmatprep.subr.mxu0 0.0
        %494 = vmatpush1.msra.mxu0 0.0
        %495 = vmatprep.subr.mxu0 0.0
        %496 = vmatpush1.msra.mxu0 0.0
        %497 = vmatprep.subr.mxu0 0.0
        %498 = vmatpush1.msra.mxu0 0.0
        %499 = vmatprep.subr.mxu0 0.0
        %500 = vmatpush1.msra.mxu0 0.0
        %501 = vmatprep.subr.mxu0 0.0
        %502 = vmatpush1.msra.mxu0 0.0
        %503 = vmatprep.subr.mxu0 0.0
        %504 = vmatpush1.msra.mxu0 0.0
        %505 = vmatprep.subr.mxu0 0.0
        %506 = vmatpush1.msra.mxu0 0.0
        %507 = vmatprep.subr.mxu0 0.0
        %508 = vmatpush1.msra.mxu0 0.0
        %509 = vmatprep.subr.mxu0 0.0
        %510 = vmatpush1.msra.mxu0 0.0
        %511 = vmatprep.mubr.f32.mxu0 0.0
        %512 = vmatmul.mubr.f32.gmra.mrb[0].mxu0 %v446
        %v513 = vpop.f32.mrb[0].mxu0
        %v514 = vadd.f32 0.0, %v513
        %v515 = vpop.f32.mrb[0].mxu0
        %516 = vdwg.mxu0
        %517 = vst.msk [vmem:[%s246] sm:$0xff] %vm305, %v514
        %518 = vst [vmem:[%s253] sm:$0xff] %v446
        %s519 = sand.u32 %s124, 1
        %s520 = scalar_lea.sflag [#allocation3], %s519
        %s521 = sand.u32 %s124, 1
        %s522 = smul.addr %s521, 8
        %s523 = scalar_lea.vmem [#allocation2], %s522
        %s524 = sand.u32 %s152, 1
        %s525 = scalar_lea.sflag [#allocation5], %s524
        %s526 = sand.u32 %s152, 1
        %s527 = smul.addr %s526, 8
        %s528 = scalar_lea.vmem [#allocation4], %s527
        // Predicated region
        $region33: #{tpu_custom_call.1} parent=31 // pred_check
          %p529 = pneg %p134
        $region34: #{tpu_custom_call.1} parent=31 // pred_check_branch
          %531 = sbr.rel (%p529) target = $region36
        $region35: #{tpu_custom_call.1} parent=31 // pred_region
          %s533 = ssub.s32 128, 128
          %534 = vsyncadd %s520, %s533
          %s535 = sadd.s32 %s27, %s26
          %s536 = smul.addr %s535, 128
          %s537 = scalar_lea.hbm %s3, %s536
          %s539 = sshll.u32 %s523, 4
          %s540 = int_to_ptr.vmem [resolvable:$true] %s539
          %542 = dma.vmem_to_hbm [thread:$0]  %s540, 128, %s537, %s520
        $region36: #{tpu_custom_call.1} parent=31 // pred_fallthru
          _
        // Predicated region
        $region37: #{tpu_custom_call.1} parent=31 // pred_check
          %p543 = pneg %p162
        $region38: #{tpu_custom_call.1} parent=31 // pred_check_branch
          %545 = sbr.rel (%p543) target = $region40
        $region39: #{tpu_custom_call.1} parent=31 // pred_region
          %s547 = ssub.s32 128, 128
          %548 = vsyncadd %s525, %s547
          %s549 = sadd.s32 %s27, %s26
          %s550 = smul.addr %s549, 128
          %s551 = scalar_lea.hbm %s4, %s550
          %s553 = sshll.u32 %s528, 4
          %s554 = int_to_ptr.vmem [resolvable:$true] %s553
          %556 = dma.vmem_to_hbm [thread:$0]  %s554, 128, %s551, %s525
        $region40: #{tpu_custom_call.1} parent=31 // pred_fallthru
          _
      $region32: #{tpu_custom_call.1} parent=5 // pred_fallthru
        _
      %p557 = scmp.le.s32.totalorder 2, %s17
      // Predicated region
      $region41: #{tpu_custom_call.1} parent=5 // pred_check
        %p558 = pneg %p557
      $region42: #{tpu_custom_call.1} parent=5 // pred_check_branch
        %560 = sbr.rel (%p558) target = $region44
      $region43: #{tpu_custom_call.1} parent=5 // pred_region
        %s561 = ssub.s32 %s17, 2
        // Predicated region
        $region45: #{tpu_custom_call.1} parent=43 // pred_check
          %p562 = pneg %p140
        $region46: #{tpu_custom_call.1} parent=43 // pred_check_branch
          %564 = sbr.rel (%p562) target = $region48
        $region47: #{tpu_custom_call.1} parent=43 // pred_region
          %s565 = sand.u32 %s125, 1
          %s566 = scalar_lea.sflag [#allocation3], %s565
          %s567 = sand.u32 %s125, 1
          %s568 = smul.addr %s567, 8
          %s569 = scalar_lea.vmem [#allocation2], %s568
          %570 = dma.done %s566, 128
        $region48: #{tpu_custom_call.1} parent=43 // pred_fallthru
          _
        // Predicated region
        $region49: #{tpu_custom_call.1} parent=43 // pred_check
          %p571 = pneg %p168
        $region50: #{tpu_custom_call.1} parent=43 // pred_check_branch
          %573 = sbr.rel (%p571) target = $region52
        $region51: #{tpu_custom_call.1} parent=43 // pred_region
          %s574 = sand.u32 %s153, 1
          %s575 = scalar_lea.sflag [#allocation5], %s574
          %s576 = sand.u32 %s153, 1
          %s577 = smul.addr %s576, 8
          %s578 = scalar_lea.vmem [#allocation4], %s577
          %579 = dma.done %s575, 128
        $region52: #{tpu_custom_call.1} parent=43 // pred_fallthru
          _
      $region44: #{tpu_custom_call.1} parent=5 // pred_fallthru
        _
    $region6: #{tpu_custom_call.1} parent=1 // loop_footer
      %s21 = sadd.s32 1, %s17
    $region7: #{tpu_custom_call.1} parent=1 // loop_footer_branch
      %16 = sbr.rel target = $region3
    $region8: #{tpu_custom_call.1} parent=1 // loop_exit
      _
    %580 = vsyncpa [#allocation3], 1
    %s581 = scalar_lea.sflag [#allocation3], 1
    %582 = vsyncpa %s581, 1
    %583 = vsyncpa [#allocation5], 1
    %s584 = scalar_lea.sflag [#allocation5], 1
    %585 = vsyncpa %s584, 1

</llo_original>
